<compile_context>
chip_gen: v5e
topology: v5e:2x2
jax: 0.10.0
libtpu: 0.0.40
codegen_flags: <defaults>
</compile_context>

<pallas_src>
import functools

import jax
import jax.numpy as jnp
from jax.experimental import pallas as pl
from jax.experimental.pallas import tpu as pltpu


def _round_up(x, m):
    return (x + m - 1) // m * m


def _tpu_vmem_and_kind():
    """(physical VMEM bytes, device_kind string, query-succeeded flag)."""
    try:
        phys = int(pltpu.get_tpu_info().vmem_capacity_bytes)
        known = True
    except Exception:
        phys, known = 64 * 2**20, False        # conservative (v7x-sized) default
    try:
        kind = jax.devices()[0].device_kind.lower()
    except Exception:
        kind = ""
    return phys, kind, known


def _pick_s_chunk(S, max_chunks=8):
    """Sequence-chunk size for the pooled sum: a multiple-of-8 divisor of S with
    at most `max_chunks` chunks (bounds the live f32 temp without a long
    unrolled loop). Falls back to S (single chunk) for small / odd S."""
    if S <= 128 or S % 8 != 0:
        return S
    c = 8 * pl.cdiv(S, 8 * max_chunks)
    while S % c != 0:
        c += 8
    return c


def _vmem_per_row(S, F, H, x_item, op_item, casting, s_chunk):
    """Per-batch-row VMEM footprint of one grid step (bytes), including the
    bf16 MXU operand copy and the f32 intermediates."""
    return (
        2 * S * F * x_item                          # double-buffered x tile
        + (S * F * op_item if casting else 0)       # bf16 MXU operand copy of x
        + 2 * S * H * 4                             # h and h*w2 f32 temps
        + 3 * s_chunk * F * 4                       # chunked f32 pooling temps
        + 8 * S * 4                                 # score / softmax temps
        + 2 * F * x_item + 2 * F * 4                # double-buffered out + pooled acc
    )


def _default_block_b(B, S, per_row, *, mxu_rows, vmem_budget_bytes):
    """Rows per grid step: multiple of 8, aiming for BB*S >= mxu_rows MXU rows
    (128 on v5e, 256 on v6e/v7x), capped by a generation-aware VMEM budget."""
    bb = max(8, _round_up(pl.cdiv(mxu_rows, max(S, 1)), 8))
    bb = min(bb, _round_up(B, 8))
    bb_cap = max(8, (vmem_budget_bytes // max(per_row, 1)) // 8 * 8)
    return max(8, min(bb, bb_cap))


def _attention_kernel(x_ref, w1_ref, b1_ref, w2_ref, b2_ref, o_ref, *, s_chunk):
    # x_ref:  (BB, S, F)  batch rows of the current grid step (native dtype)
    # w1_ref: (F, H) in the MXU operand dtype; b1_ref: (1, H) f32
    # w2_ref: (1, H) f32 (second Linear's weight as a row); b2_ref: (1, 1) f32
    # o_ref:  (BB, F)
    bb, s, f = x_ref.shape
    h_dim = w1_ref.shape[1]

    x = x_ref[...]                                   # (BB, S, F)
    x2d = x.reshape(bb * s, f)                       # layout-preserving reshape
    a = x2d if x2d.dtype == w1_ref.dtype else x2d.astype(w1_ref.dtype)

    # Linear(F->H) + tanh: one MXU matmul over all BB*S rows, f32 accumulate.
    # TODO(synk): for deployments with H < 128 the MXU N-dim is underfilled; a
    # VPU broadcast-mul + lane-reduce (like the H->1 projection below) would be
    # cheaper at such shapes, and F < 128 outputs use masked vst stores.
    h = jnp.tanh(
        jnp.dot(a, w1_ref[...], preferred_element_type=jnp.float32)
        + b1_ref[...].astype(jnp.float32)
    )                                                # (BB*S, H) f32

    # Linear(H->1): VPU multiply + lane reduction; keepdims keeps S on the
    # sublane axis so the softmax and the broadcast over F need no relayout.
    h3 = h.reshape(bb, s, h_dim)                     # (BB, S, H)
    scores = jnp.sum(h3 * w2_ref[...].astype(jnp.float32), axis=-1, keepdims=True)
    scores = scores + b2_ref[...].astype(jnp.float32)          # (BB, S, 1)

    # Softmax over the sequence (sublane) axis.
    m = jnp.max(scores, axis=1, keepdims=True)       # (BB, 1, 1)
    e = jnp.exp(scores - m)
    denom = jnp.sum(e, axis=1, keepdims=True)        # (BB, 1, 1)
    w = e * pl.reciprocal(denom, approx=True)        # (BB, S, 1) f32, EUP vrcp

    # Weighted pooling over S. Chunked over the sequence so only a
    # (BB, chunk, F) f32 temp is live (no full f32 copy of the x tile).
    # TODO(synk): for very long S (v7x, 64 MiB VMEM) stream S with an online
    # softmax (m/l/acc scratch) instead of holding the whole (BB, S, F) tile.
    if s_chunk >= s:
        pooled = jnp.sum(x.astype(jnp.float32) * w, axis=1)            # (BB, F)
    else:
        pooled = jnp.zeros((bb, f), jnp.float32)
        for c0 in range(0, s, s_chunk):
            xc = x_ref[:, c0:c0 + s_chunk, :].astype(jnp.float32)
            pooled = pooled + jnp.sum(xc * w[:, c0:c0 + s_chunk, :], axis=1)
    o_ref[...] = pooled.astype(o_ref.dtype)


def _param_spec(block_shape, index_map, single_buffer):
    """BlockSpec for a resident parameter (constant index map). Single-buffered
    when supported, reclaiming its double-buffer VMEM for bigger x tiles."""
    if single_buffer:
        try:
            return pl.BlockSpec(block_shape, index_map, pipeline_mode=pl.Buffered(1))
        except TypeError:                 # jax without BlockSpec.pipeline_mode
            pass
    return pl.BlockSpec(block_shape, index_map)


def attention_module(x, w1, b1, w2, b2, *, block_b=None, mxu_operand_dtype=None,
                     vmem_limit_bytes=None, x_buffer_count=None):
    """x: (B, S, F); w1: (F, H); b1: (H,); w2: (H, 1); b2: (1,). Returns (B, F)."""
    B, S, F = x.shape
    H = w1.shape[1]
    x_item = x.dtype.itemsize

    # bf16 MXU operands on f32 inputs (v6e/v7x native throughput; f32 accumulate).
    if mxu_operand_dtype is None:
        mxu_operand_dtype = jnp.bfloat16 if x.dtype == jnp.float32 else x.dtype
    mxu_operand_dtype = jnp.dtype(mxu_operand_dtype)
    op_item = mxu_operand_dtype.itemsize
    casting = mxu_operand_dtype != x.dtype

    phys_vmem, kind, known = _tpu_vmem_and_kind()
    is_v5 = "v5" in kind
    is_v7x = ("v7" in kind) or (known and phys_vmem <= 80 * 2**20)

    s_chunk = _pick_s_chunk(S)
    mxu_rows = 128 if is_v5 else 256          # v5e MXU is 4x128^2; v6e/v7x 2x256^2
    per_row = _vmem_per_row(S, F, H, x_item, op_item, casting, s_chunk)
    param_bytes = F * H * op_item + (2 * H + 1) * 4

    if block_b is None:
        budget = min(phys_vmem // 4, 40 * 2**20)      # ~32 MiB on v5e/v6e
        if is_v7x:
            budget = min(budget, 16 * 2**20)          # ~16 MiB on v7x (64 MiB VMEM)
        budget = max(budget - 2 * param_bytes, 2 * 2**20)
        block_b = _default_block_b(B, S, per_row, mxu_rows=mxu_rows,
                                   vmem_budget_bytes=budget)
        # v7x: ensure >=2 grid steps (when B allows) so both TensorCores get work.
        if is_v7x and B > 8:
            block_b = min(block_b, max(8, (B // 2) // 8 * 8))
    block_b = _round_up(max(int(block_b), 1), 8)

    # Pad the batch to a multiple of block_b (zero rows give a uniform softmax
    # times zero inputs -> zero pooled rows, sliced off below).
    B_pad = _round_up(B, block_b)
    x_in = jnp.pad(x, ((0, B_pad - B), (0, 0), (0, 0))) if B_pad != B else x

    if vmem_limit_bytes is None:
        tile_bytes = block_b * per_row + 2 * param_bytes
        limit_cap = (44 * 2**20) if (is_v7x or not known) else (96 * 2**20)
        vmem_limit_bytes = int(min(limit_cap, max(16 * 2**20, 2 * tile_bytes)))

    w1_in = w1.astype(mxu_operand_dtype)
    b1_2d = b1.reshape(1, H).astype(jnp.float32)
    w2_row = w2.reshape(1, H).astype(jnp.float32)   # (H, 1) -> (1, H) row
    b2_2d = b2.reshape(1, 1).astype(jnp.float32)

    kernel = functools.partial(_attention_kernel, s_chunk=s_chunk)

    def _call(single_buffer_params):
        if x_buffer_count is not None:
            x_spec = pl.BlockSpec((block_b, S, F), lambda i: (i, 0, 0),
                                  pipeline_mode=pl.Buffered(int(x_buffer_count)))
        else:
            x_spec = pl.BlockSpec((block_b, S, F), lambda i: (i, 0, 0))
        return pl.pallas_call(
            kernel,
            out_shape=jax.ShapeDtypeStruct((B_pad, F), x.dtype),
            grid_spec=pltpu.PrefetchScalarGridSpec(
                num_scalar_prefetch=0,
                grid=(B_pad // block_b,),
                in_specs=[
                    x_spec,                                             # x rows
                    _param_spec((F, H), lambda i: (0, 0), single_buffer_params),
                    _param_spec((1, H), lambda i: (0, 0), single_buffer_params),
                    _param_spec((1, H), lambda i: (0, 0), single_buffer_params),
                    _param_spec((1, 1), lambda i: (0, 0), single_buffer_params),
                ],
                out_specs=pl.BlockSpec((block_b, F), lambda i: (i, 0)),
            ),
            compiler_params=pltpu.CompilerParams(
                dimension_semantics=("parallel",),
                vmem_limit_bytes=vmem_limit_bytes,
            ),
        )(x_in, w1_in, b1_2d, w2_row, b2_2d)

    try:
        out = _call(True)
    except Exception:
        # Fallback if single-buffered parameter specs are rejected by this jax.
        out = _call(False)
    return out[:B]


def attention_module_ref(x, w1, b1, w2, b2):
    """Pure-JAX reference matching the PyTorch forward."""
    h = jnp.tanh(jnp.einsum("bsf,fh->bsh", x, w1) + b1)
    scores = jnp.einsum("bsh,ho->bso", h, w2) + b2        # (B, S, 1)
    w = jax.nn.softmax(scores, axis=1)
    return jnp.sum(x * w, axis=1)                         # (B, F)


if __name__ == "__main__":
    # Shapes implied by the forward: x is (batch, seq, in_features).
    B, S, F, H = 2, 8, 32, 32

    key = jax.random.PRNGKey(0)
    kx, k1, k2, k3, k4 = jax.random.split(key, 5)
    x = jax.random.normal(kx, (B, S, F), dtype=jnp.float32)
    w1 = jax.random.normal(k1, (F, H), dtype=jnp.float32) * 0.1   # Linear stored (in, out)
    b1 = jax.random.normal(k2, (H,), dtype=jnp.float32) * 0.1
    w2 = jax.random.normal(k3, (H, 1), dtype=jnp.float32) * 0.1
    b2 = jax.random.normal(k4, (1,), dtype=jnp.float32) * 0.1

    ref = attention_module_ref(x, w1, b1, w2, b2)

    # 1) Exact path (f32 MXU operands): tight tolerance (only the EUP approx
    #    reciprocal in the softmax denominator differs from the reference).
    out_exact = jax.block_until_ready(
        attention_module(x, w1, b1, w2, b2, mxu_operand_dtype=jnp.float32))
    assert out_exact.shape == (B, F), out_exact.shape
    assert jnp.allclose(out_exact, ref, atol=2e-3, rtol=2e-3), (
        float(jnp.max(jnp.abs(out_exact - ref))))

    # 2) Default perf path (bf16 MXU operands, f32 accumulation).
    out_fast = jax.block_until_ready(attention_module(x, w1, b1, w2, b2))
    assert jnp.allclose(out_fast, ref, atol=2e-2, rtol=2e-2), (
        float(jnp.max(jnp.abs(out_fast - ref))))

    # 3) A second (still small) shape that exercises the chunked pooling path.
    B2, S2, F2, H2 = 4, 256, 128, 64
    kx, k1, k2, k3, k4 = jax.random.split(jax.random.PRNGKey(0), 5)
    x2 = jax.random.normal(kx, (B2, S2, F2), dtype=jnp.float32)
    w1b = jax.random.normal(k1, (F2, H2), dtype=jnp.float32) * 0.1
    b1b = jax.random.normal(k2, (H2,), dtype=jnp.float32) * 0.1
    w2b = jax.random.normal(k3, (H2, 1), dtype=jnp.float32) * 0.1
    b2b = jax.random.normal(k4, (1,), dtype=jnp.float32) * 0.1
    out2 = jax.block_until_ready(attention_module(x2, w1b, b1b, w2b, b2b))
    ref2 = attention_module_ref(x2, w1b, b1b, w2b, b2b)
    assert out2.shape == (B2, F2), out2.shape
    assert jnp.allclose(out2, ref2, atol=2e-2, rtol=2e-2), (
        float(jnp.max(jnp.abs(out2 - ref2))))

    print("KERNEL_OK")
</pallas_src>

<mosaic_0001>
module attributes {stable_mosaic.version = 11 : i64} {
  func.func @_attention_kernel(%arg0: i32, %arg1: memref<8x8x32xf32, #tpu.memory_space<vmem>>, %arg2: memref<32x32xf32, #tpu.memory_space<vmem>>, %arg3: memref<1x32xf32, #tpu.memory_space<vmem>>, %arg4: memref<1x32xf32, #tpu.memory_space<vmem>>, %arg5: memref<1x1xf32, #tpu.memory_space<vmem>>, %arg6: memref<8x32xf32, #tpu.memory_space<vmem>>) attributes {dimension_semantics = [#tpu.dimension_semantics<parallel>], iteration_bounds = array<i64: 1>, scalar_prefetch = 0 : i64, scratch_operands = 0 : i64, tpu.core_type = #tpu.core_type<tc>, window_params = [{transform_indices = @transform_0, window_bounds = array<i64: 8, 8, 32>}, {pipeline_mode = #tpu.pipeline_mode<synchronous>, transform_indices = @transform_1, window_bounds = array<i64: 32, 32>}, {pipeline_mode = #tpu.pipeline_mode<synchronous>, transform_indices = @transform_2, window_bounds = array<i64: 1, 32>}, {pipeline_mode = #tpu.pipeline_mode<synchronous>, transform_indices = @transform_3, window_bounds = array<i64: 1, 32>}, {pipeline_mode = #tpu.pipeline_mode<synchronous>, transform_indices = @transform_4, window_bounds = array<i64: 1, 1>}, {transform_indices = @transform_5, window_bounds = array<i64: 8, 32>}]} {
    %c0 = arith.constant 0 : index
    %c0_0 = arith.constant 0 : index
    %c0_1 = arith.constant 0 : index
    %0 = vector.load %arg1[%c0, %c0_0, %c0_1] : memref<8x8x32xf32, #tpu.memory_space<vmem>>, vector<8x8x32xf32>
    %1 = vector.shape_cast %0 : vector<8x8x32xf32> to vector<64x32xf32>
    %c0_2 = arith.constant 0 : index
    %c0_3 = arith.constant 0 : index
    %2 = vector.load %arg2[%c0_2, %c0_3] : memref<32x32xf32, #tpu.memory_space<vmem>>, vector<32x32xf32>
    %cst = arith.constant dense<0.000000e+00> : vector<64x32xf32>
    %3 = tpu.matmul %1, %2, %cst {dimension_numbers = #tpu.dot_dimension_numbers<[1], [0], [0], [1], [0, 0, 1, 1], [], []>} : vector<64x32xf32>, vector<32x32xf32>, vector<64x32xf32> -> vector<64x32xf32>
    %c0_4 = arith.constant 0 : index
    %c0_5 = arith.constant 0 : index
    %4 = vector.load %arg3[%c0_4, %c0_5] : memref<1x32xf32, #tpu.memory_space<vmem>>, vector<1x32xf32>
    %5 = vector.broadcast %4 : vector<1x32xf32> to vector<64x32xf32>
    %6 = arith.addf %3, %5 : vector<64x32xf32>
    %7 = math.tanh %6 : vector<64x32xf32>
    %8 = vector.shape_cast %7 : vector<64x32xf32> to vector<8x8x32xf32>
    %c0_6 = arith.constant 0 : index
    %c0_7 = arith.constant 0 : index
    %9 = vector.load %arg4[%c0_6, %c0_7] : memref<1x32xf32, #tpu.memory_space<vmem>>, vector<1x32xf32>
    %10 = vector.shape_cast %9 : vector<1x32xf32> to vector<1x1x32xf32>
    %11 = vector.broadcast %10 : vector<1x1x32xf32> to vector<8x8x32xf32>
    %12 = arith.mulf %8, %11 : vector<8x8x32xf32>
    %cst_8 = arith.constant dense<0.000000e+00> : vector<8x8xf32>
    %13 = vector.multi_reduction <add>, %12, %cst_8 [2] : vector<8x8x32xf32> to vector<8x8xf32>
    %14 = vector.shape_cast %13 : vector<8x8xf32> to vector<8x8x1xf32>
    %c0_9 = arith.constant 0 : index
    %c0_10 = arith.constant 0 : index
    %15 = vector.load %arg5[%c0_9, %c0_10] : memref<1x1xf32, #tpu.memory_space<vmem>>, vector<1x1xf32>
    %16 = vector.shape_cast %15 : vector<1x1xf32> to vector<1x1x1xf32>
    %17 = vector.broadcast %16 : vector<1x1x1xf32> to vector<8x8x1xf32>
    %18 = arith.addf %14, %17 : vector<8x8x1xf32>
    %cst_11 = arith.constant dense<0xFF800000> : vector<8x1xf32>
    %19 = vector.multi_reduction <maximumf>, %18, %cst_11 [1] : vector<8x8x1xf32> to vector<8x1xf32>
    %20 = vector.shape_cast %19 : vector<8x1xf32> to vector<8x1x1xf32>
    %21 = vector.broadcast %20 : vector<8x1x1xf32> to vector<8x8x1xf32>
    %22 = arith.subf %18, %21 : vector<8x8x1xf32>
    %23 = math.exp %22 : vector<8x8x1xf32>
    %cst_12 = arith.constant dense<0.000000e+00> : vector<8x1xf32>
    %24 = vector.multi_reduction <add>, %23, %cst_12 [1] : vector<8x8x1xf32> to vector<8x1xf32>
    %25 = vector.shape_cast %24 : vector<8x1xf32> to vector<8x1x1xf32>
    %26 = tpu.reciprocal %25 {approx = true} : vector<8x1x1xf32> -> vector<8x1x1xf32>
    %27 = vector.broadcast %26 : vector<8x1x1xf32> to vector<8x8x1xf32>
    %28 = arith.mulf %23, %27 : vector<8x8x1xf32>
    %29 = vector.broadcast %28 : vector<8x8x1xf32> to vector<8x8x32xf32>
    %30 = arith.mulf %0, %29 : vector<8x8x32xf32>
    %cst_13 = arith.constant dense<0.000000e+00> : vector<8x32xf32>
    %31 = vector.multi_reduction <add>, %30, %cst_13 [1] : vector<8x8x32xf32> to vector<8x32xf32>
    %c0_14 = arith.constant 0 : index
    %c0_15 = arith.constant 0 : index
    %32 = vector.load %arg6[%c0_14, %c0_15] : memref<8x32xf32, #tpu.memory_space<vmem>>, vector<8x32xf32>
    tpu.vector_store %arg6[%c0_14, %c0_15], %31 {strides = array<i32>} : memref<8x32xf32, #tpu.memory_space<vmem>>, vector<8x32xf32>,
    return
  }
  func.func @transform_0(%arg0: i32) -> (i32, i32, i32) {
    %c0_i32 = arith.constant 0 : i32
    %c0_i32_0 = arith.constant 0 : i32
    %c0_i32_1 = arith.constant 0 : i32
    return %arg0, %c0_i32, %c0_i32_0 : i32, i32, i32
  }
  func.func @transform_1(%arg0: i32) -> (i32, i32) {
    %c0_i32 = arith.constant 0 : i32
    %c0_i32_0 = arith.constant 0 : i32
    %c0_i32_1 = arith.constant 0 : i32
    return %c0_i32, %c0_i32_0 : i32, i32
  }
  func.func @transform_2(%arg0: i32) -> (i32, i32) {
    %c0_i32 = arith.constant 0 : i32
    %c0_i32_0 = arith.constant 0 : i32
    %c0_i32_1 = arith.constant 0 : i32
    return %c0_i32, %c0_i32_0 : i32, i32
  }
  func.func @transform_3(%arg0: i32) -> (i32, i32) {
    %c0_i32 = arith.constant 0 : i32
    %c0_i32_0 = arith.constant 0 : i32
    %c0_i32_1 = arith.constant 0 : i32
    return %c0_i32, %c0_i32_0 : i32, i32
  }
  func.func @transform_4(%arg0: i32) -> (i32, i32) {
    %c0_i32 = arith.constant 0 : i32
    %c0_i32_0 = arith.constant 0 : i32
    %c0_i32_1 = arith.constant 0 : i32
    return %c0_i32, %c0_i32_0 : i32, i32
  }
  func.func @transform_5(%arg0: i32) -> (i32, i32) {
    %c0_i32 = arith.constant 0 : i32
    %c0_i32_0 = arith.constant 0 : i32
    return %arg0, %c0_i32 : i32, i32
  }
}

module attributes {stable_mosaic.version = 11 : i64} {
  func.func @_attention_kernel(%arg0: i32, %arg1: memref<8x8x32xf32, #tpu.memory_space<vmem>>, %arg2: memref<32x32xf32, #tpu.memory_space<vmem>>, %arg3: memref<1x32xf32, #tpu.memory_space<vmem>>, %arg4: memref<1x32xf32, #tpu.memory_space<vmem>>, %arg5: memref<1x1xf32, #tpu.memory_space<vmem>>, %arg6: memref<8x32xf32, #tpu.memory_space<vmem>>) attributes {dimension_semantics = [#tpu.dimension_semantics<parallel>], iteration_bounds = array<i64: 1>, scalar_prefetch = 0 : i64, scratch_operands = 0 : i64, tpu.core_type = #tpu.core_type<tc>, window_params = [{transform_indices = @transform_0, window_bounds = array<i64: 8, 8, 32>}, {pipeline_mode = #tpu.pipeline_mode<synchronous>, transform_indices = @transform_1, window_bounds = array<i64: 32, 32>}, {pipeline_mode = #tpu.pipeline_mode<synchronous>, transform_indices = @transform_2, window_bounds = array<i64: 1, 32>}, {pipeline_mode = #tpu.pipeline_mode<synchronous>, transform_indices = @transform_3, window_bounds = array<i64: 1, 32>}, {pipeline_mode = #tpu.pipeline_mode<synchronous>, transform_indices = @transform_4, window_bounds = array<i64: 1, 1>}, {transform_indices = @transform_5, window_bounds = array<i64: 8, 32>}]} {
    %c0 = arith.constant 0 : index
    %c0_0 = arith.constant 0 : index
    %c0_1 = arith.constant 0 : index
    %0 = vector.load %arg1[%c0, %c0_0, %c0_1] : memref<8x8x32xf32, #tpu.memory_space<vmem>>, vector<8x8x32xf32>
    %1 = vector.shape_cast %0 : vector<8x8x32xf32> to vector<64x32xf32>
    %c0_2 = arith.constant 0 : index
    %c0_3 = arith.constant 0 : index
    %2 = vector.load %arg2[%c0_2, %c0_3] : memref<32x32xf32, #tpu.memory_space<vmem>>, vector<32x32xf32>
    %cst = arith.constant dense<0.000000e+00> : vector<64x32xf32>
    %3 = tpu.matmul %1, %2, %cst {dimension_numbers = #tpu.dot_dimension_numbers<[1], [0], [0], [1], [0, 0, 1, 1], [], []>} : vector<64x32xf32>, vector<32x32xf32>, vector<64x32xf32> -> vector<64x32xf32>
    %c0_4 = arith.constant 0 : index
    %c0_5 = arith.constant 0 : index
    %4 = vector.load %arg3[%c0_4, %c0_5] : memref<1x32xf32, #tpu.memory_space<vmem>>, vector<1x32xf32>
    %5 = vector.broadcast %4 : vector<1x32xf32> to vector<64x32xf32>
    %6 = arith.addf %3, %5 : vector<64x32xf32>
    %7 = math.tanh %6 : vector<64x32xf32>
    %8 = vector.shape_cast %7 : vector<64x32xf32> to vector<8x8x32xf32>
    %c0_6 = arith.constant 0 : index
    %c0_7 = arith.constant 0 : index
    %9 = vector.load %arg4[%c0_6, %c0_7] : memref<1x32xf32, #tpu.memory_space<vmem>>, vector<1x32xf32>
    %10 = vector.shape_cast %9 : vector<1x32xf32> to vector<1x1x32xf32>
    %11 = vector.broadcast %10 : vector<1x1x32xf32> to vector<8x8x32xf32>
    %12 = arith.mulf %8, %11 : vector<8x8x32xf32>
    %cst_8 = arith.constant dense<0.000000e+00> : vector<8x8xf32>
    %13 = vector.multi_reduction <add>, %12, %cst_8 [2] : vector<8x8x32xf32> to vector<8x8xf32>
    %14 = vector.shape_cast %13 : vector<8x8xf32> to vector<8x8x1xf32>
    %c0_9 = arith.constant 0 : index
    %c0_10 = arith.constant 0 : index
    %15 = vector.load %arg5[%c0_9, %c0_10] : memref<1x1xf32, #tpu.memory_space<vmem>>, vector<1x1xf32>
    %16 = vector.shape_cast %15 : vector<1x1xf32> to vector<1x1x1xf32>
    %17 = vector.broadcast %16 : vector<1x1x1xf32> to vector<8x8x1xf32>
    %18 = arith.addf %14, %17 : vector<8x8x1xf32>
    %cst_11 = arith.constant dense<0xFF800000> : vector<8x1xf32>
    %19 = vector.multi_reduction <maximumf>, %18, %cst_11 [1] : vector<8x8x1xf32> to vector<8x1xf32>
    %20 = vector.shape_cast %19 : vector<8x1xf32> to vector<8x1x1xf32>
    %21 = vector.broadcast %20 : vector<8x1x1xf32> to vector<8x8x1xf32>
    %22 = arith.subf %18, %21 : vector<8x8x1xf32>
    %23 = math.exp %22 : vector<8x8x1xf32>
    %cst_12 = arith.constant dense<0.000000e+00> : vector<8x1xf32>
    %24 = vector.multi_reduction <add>, %23, %cst_12 [1] : vector<8x8x1xf32> to vector<8x1xf32>
    %25 = vector.shape_cast %24 : vector<8x1xf32> to vector<8x1x1xf32>
    %26 = tpu.reciprocal %25 {approx = true} : vector<8x1x1xf32> -> vector<8x1x1xf32>
    %27 = vector.broadcast %26 : vector<8x1x1xf32> to vector<8x8x1xf32>
    %28 = arith.mulf %23, %27 : vector<8x8x1xf32>
    %29 = vector.broadcast %28 : vector<8x8x1xf32> to vector<8x8x32xf32>
    %30 = arith.mulf %0, %29 : vector<8x8x32xf32>
    %cst_13 = arith.constant dense<0.000000e+00> : vector<8x32xf32>
    %31 = vector.multi_reduction <add>, %30, %cst_13 [1] : vector<8x8x32xf32> to vector<8x32xf32>
    %c0_14 = arith.constant 0 : index
    %c0_15 = arith.constant 0 : index
    %32 = vector.load %arg6[%c0_14, %c0_15] : memref<8x32xf32, #tpu.memory_space<vmem>>, vector<8x32xf32>
    tpu.vector_store %arg6[%c0_14, %c0_15], %31 {strides = array<i32>} : memref<8x32xf32, #tpu.memory_space<vmem>>, vector<8x32xf32>,
    return
  }
  func.func @transform_0(%arg0: i32) -> (i32, i32, i32) {
    %c0_i32 = arith.constant 0 : i32
    %c0_i32_0 = arith.constant 0 : i32
    %c0_i32_1 = arith.constant 0 : i32
    return %arg0, %c0_i32, %c0_i32_0 : i32, i32, i32
  }
  func.func @transform_1(%arg0: i32) -> (i32, i32) {
    %c0_i32 = arith.constant 0 : i32
    %c0_i32_0 = arith.constant 0 : i32
    %c0_i32_1 = arith.constant 0 : i32
    return %c0_i32, %c0_i32_0 : i32, i32
  }
  func.func @transform_2(%arg0: i32) -> (i32, i32) {
    %c0_i32 = arith.constant 0 : i32
    %c0_i32_0 = arith.constant 0 : i32
    %c0_i32_1 = arith.constant 0 : i32
    return %c0_i32, %c0_i32_0 : i32, i32
  }
  func.func @transform_3(%arg0: i32) -> (i32, i32) {
    %c0_i32 = arith.constant 0 : i32
    %c0_i32_0 = arith.constant 0 : i32
    %c0_i32_1 = arith.constant 0 : i32
    return %c0_i32, %c0_i32_0 : i32, i32
  }
  func.func @transform_4(%arg0: i32) -> (i32, i32) {
    %c0_i32 = arith.constant 0 : i32
    %c0_i32_0 = arith.constant 0 : i32
    %c0_i32_1 = arith.constant 0 : i32
    return %c0_i32, %c0_i32_0 : i32, i32
  }
  func.func @transform_5(%arg0: i32) -> (i32, i32) {
    %c0_i32 = arith.constant 0 : i32
    %c0_i32_0 = arith.constant 0 : i32
    return %arg0, %c0_i32 : i32, i32
  }
}

</mosaic_0001>

<llo_original>
// kernel: tpu_custom_call.1
$region0: #{tpu_custom_call.1}
  #allocation0 [shape = 'u32[]', space=smem, size = 0x4, offset = 0x4, fixed_abs, tag = 'smem constant byte address 0x4 - core index']
  #allocation1 [shape = 'u32[72,128]{1,0:T(1,128)}', space=vmem, size = 0x9000, scoped, tag = 'internal scratch']
  #allocation2 [shape = 'f32[1,1]{1,0:T(1,128)S(1)}', space=vmem, size = 0x200, scoped, tag = 'scoped memory for tpu_custom_call.1']
  %s0 = inlined_call_operand.hbm [shape: f32[8,8,32], index: 0, kind: input, shape index: {}]
  %s1 = inlined_call_operand.hbm [shape: f32[32,32], index: 1, kind: input, shape index: {}]
  %s2 = inlined_call_operand.vmem [shape: f32[1,32], index: 2, kind: input, shape index: {}]
  %s3 = inlined_call_operand.vmem [shape: f32[1,32], index: 3, kind: input, shape index: {}]
  %s4 = inlined_call_operand.<no memory space> [shape: f32[1,1], index: 4, kind: input, shape index: {}]
  %s5 = inlined_call_operand.hbm [shape: f32[8,32], index: 5, kind: output, shape index: {}]
  %s6 = sld [smem:[#allocation0]]
  $region38: #{tpu_custom_call.1} parent=0
    _
  %s8 = ssub.s32 1, %s6
  %s9 = scalar_select 0, %s8, %s6
  %v10 = vstv %s4
  %11 = vst [vmem:[#allocation2] sm:$0x1] %v10
  $region1: #{tpu_custom_call.1} parent=0
    #allocation3 [shape = 'u8[32768]{0}', space=vmem, size = 0x8000, scoped, tag = 'input window, operand 0, single buffered']
    #allocation4 [shape = 's32[1]{0}', space=sflag, size = 0x4, scoped, tag = 'scoped memory for tpu_custom_call.1']
    #allocation5 [shape = 's32[1]{0}', space=sflag, size = 0x4, scoped, tag = 'scoped memory for tpu_custom_call.1']
    #allocation6 [shape = 'u8[16384]{0}', space=vmem, size = 0x4000, scoped, tag = 'input window, operand 1, single buffered']
    #allocation7 [shape = 's32[1]{0}', space=sflag, size = 0x4, scoped, tag = 'scoped memory for tpu_custom_call.1']
    #allocation8 [shape = 'u8[4096]{0}', space=vmem, size = 0x1000, scoped, tag = 'output window, operand 0, single buffered']
    %12 = vsyncpa [#allocation4], 0
    %13 = vsyncpa [#allocation7], 0
    %14 = vsyncpa [#allocation5], 0
    // Predicated region
    $region2: #{tpu_custom_call.1} parent=1 // pred_check
      _
    $region3: #{tpu_custom_call.1} parent=1 // pred_check_branch
      %16 = sbr.rel (0) target = $region5
    $region4: #{tpu_custom_call.1} parent=1 // pred_region
      %18 = vsyncadd [#allocation4], 0
      %s19 = sshll.u32 %s0, 4
      %s20 = int_to_ptr.hbm [resolvable:$true] %s19
      %s21 = sshll.u32 [#allocation3], 4
      %s22 = int_to_ptr.vmem [resolvable:$true] %s21
      %27 = dma.hbm_to_vmem [thread:$0]  %s20, 1024, %s22, [#allocation4], 128, 128, 8
    $region5: #{tpu_custom_call.1} parent=1 // pred_fallthru
      _
    // Predicated region
    $region6: #{tpu_custom_call.1} parent=1 // pred_check
      _
    $region7: #{tpu_custom_call.1} parent=1 // pred_check_branch
      %29 = sbr.rel (0) target = $region9
    $region8: #{tpu_custom_call.1} parent=1 // pred_region
      %31 = vsyncadd [#allocation7], 0
      %s32 = sshll.u32 %s1, 4
      %s33 = int_to_ptr.hbm [resolvable:$true] %s32
      %s34 = sshll.u32 [#allocation6], 4
      %s35 = int_to_ptr.vmem [resolvable:$true] %s34
      %40 = dma.hbm_to_vmem [thread:$0]  %s33, 512, %s35, [#allocation7], 128, 128, 8
    $region9: #{tpu_custom_call.1} parent=1 // pred_fallthru
      _
    // Predicated region
    $region10: #{tpu_custom_call.1} parent=1 // pred_check
      _
    $region11: #{tpu_custom_call.1} parent=1 // pred_check_branch
      %42 = sbr.rel (0) target = $region13
    $region12: #{tpu_custom_call.1} parent=1 // pred_region
      _
    $region13: #{tpu_custom_call.1} parent=1 // pred_fallthru
      _
    // Predicated region
    $region14: #{tpu_custom_call.1} parent=1 // pred_check
      _
    $region15: #{tpu_custom_call.1} parent=1 // pred_check_branch
      %44 = sbr.rel (0) target = $region17
    $region16: #{tpu_custom_call.1} parent=1 // pred_region
      _
    $region17: #{tpu_custom_call.1} parent=1 // pred_fallthru
      _
    // Predicated region
    $region18: #{tpu_custom_call.1} parent=1 // pred_check
      _
    $region19: #{tpu_custom_call.1} parent=1 // pred_check_branch
      %46 = sbr.rel (0) target = $region21
    $region20: #{tpu_custom_call.1} parent=1 // pred_region
      _
    $region21: #{tpu_custom_call.1} parent=1 // pred_fallthru
      _
    // Predicated region
    $region22: #{tpu_custom_call.1} parent=1 // pred_check
      _
    $region23: #{tpu_custom_call.1} parent=1 // pred_check_branch
      %48 = sbr.rel (0) target = $region25
    $region24: #{tpu_custom_call.1} parent=1 // pred_region
      %50 = dma.done [#allocation4], 1024
    $region25: #{tpu_custom_call.1} parent=1 // pred_fallthru
      _
    // Predicated region
    $region26: #{tpu_custom_call.1} parent=1 // pred_check
      _
    $region27: #{tpu_custom_call.1} parent=1 // pred_check_branch
      %52 = sbr.rel (0) target = $region29
    $region28: #{tpu_custom_call.1} parent=1 // pred_region
      %54 = dma.done [#allocation7], 512
    $region29: #{tpu_custom_call.1} parent=1 // pred_fallthru
      _
    %v55 = vld [vmem:[#allocation3] sm:$0xff]
    %v56 = vld [vmem:[#allocation3 + $0x8] sm:$0xff]
    %v57 = vld [vmem:[#allocation3 + $0x10] sm:$0xff]
    %v58 = vld [vmem:[#allocation3 + $0x18] sm:$0xff]
    %v59 = vld [vmem:[#allocation3 + $0x20] sm:$0xff]
    %v60 = vld [vmem:[#allocation3 + $0x28] sm:$0xff]
    %v61 = vld [vmem:[#allocation3 + $0x30] sm:$0xff]
    %v62 = vld [vmem:[#allocation3 + $0x38] sm:$0xff]
    %v63 = vld [vmem:[#allocation6] sm:$0xff]
    %v64 = vld [vmem:[#allocation6 + $0x8] sm:$0xff]
    %v65 = vld [vmem:[#allocation6 + $0x10] sm:$0xff]
    %v66 = vld [vmem:[#allocation6 + $0x18] sm:$0xff]
    %v67 = vld [vmem:[%s2] sm:$0x1]
    %v69 = vperm.slane %v67, 0
    %vm71 = vcmask 261120
    %v73 = vsel %vm71, %v55, 0
    %v76 = vsel %vm71, %v56, 0
    %v79 = vsel %vm71, %v57, 0
    %v82 = vsel %vm71, %v58, 0
    %v85 = vsel %vm71, %v59, 0
    %v88 = vsel %vm71, %v60, 0
    %v91 = vsel %vm71, %v61, 0
    %v94 = vsel %vm71, %v62, 0
    %96 = vmatpush.msra.mxu0 0.0
    %97 = vmatpush.msra.mxu0 0.0
    %98 = vmatpush.msra.mxu0 0.0
    %99 = vmatpush.msra.mxu0 0.0
    %100 = vmatpush.msra.mxu0 0.0
    %101 = vmatpush.msra.mxu0 0.0
    %102 = vmatpush.msra.mxu0 0.0
    %103 = vmatpush.msra.mxu0 0.0
    %104 = vmatpush.msra.mxu0 0.0
    %105 = vmatpush.msra.mxu0 0.0
    %106 = vmatpush.msra.mxu0 0.0
    %107 = vmatpush.msra.mxu0 0.0
    %108 = vmatpush.msra.mxu0 %v66
    %109 = vmatpush.msra.mxu0 %v65
    %110 = vmatpush.msra.mxu0 %v64
    %111 = vmatpush.msra.mxu0 %v63
    %112 = vmatmul.f32.gmra.mxu0 %v73
    %v113 = vpop.f32.mrf.mxu0
    %v114 = vadd.f32 %v69, %v113
    %115 = vmatmul.f32.gmra.mxu0 %v76
    %v116 = vpop.f32.mrf.mxu0
    %v117 = vadd.f32 %v69, %v116
    %118 = vmatmul.f32.gmra.mxu0 %v79
    %v119 = vpop.f32.mrf.mxu0
    %v120 = vadd.f32 %v69, %v119
    %121 = vmatmul.f32.gmra.mxu0 %v82
    %v122 = vpop.f32.mrf.mxu0
    %v123 = vadd.f32 %v69, %v122
    %124 = vmatmul.f32.gmra.mxu0 %v85
    %v125 = vpop.f32.mrf.mxu0
    %v126 = vadd.f32 %v69, %v125
    %127 = vmatmul.f32.gmra.mxu0 %v88
    %v128 = vpop.f32.mrf.mxu0
    %v129 = vadd.f32 %v69, %v128
    %130 = vmatmul.f32.gmra.mxu0 %v91
    %v131 = vpop.f32.mrf.mxu0
    %v132 = vadd.f32 %v69, %v131
    %133 = vmatmul.f32.gmra.mxu0 %v94
    %v134 = vpop.f32.mrf.mxu0
    %v135 = vadd.f32 %v69, %v134
    %136 = vdwg.mxu0
    %v137 = vtanh.pop %v114
    %v138 = vtanh.pop %v117
    %v139 = vtanh.pop %v120
    %v140 = vtanh.pop %v123
    %v141 = vtanh.pop %v126
    %v142 = vtanh.pop %v129
    %v143 = vtanh.pop %v132
    %v144 = vtanh.pop %v135
    %v145 = vld [vmem:[%s3] sm:$0x1]
    %v147 = vperm.slane %v145, 0
    %v149 = vmul.f32 %v137, %v147
    %v150 = vmul.f32 %v138, %v147
    %v151 = vmul.f32 %v139, %v147
    %v152 = vmul.f32 %v140, %v147
    %v153 = vmul.f32 %v141, %v147
    %v154 = vmul.f32 %v142, %v147
    %v155 = vmul.f32 %v143, %v147
    %v156 = vmul.f32 %v144, %v147
    %v157 = vsel %vm71, %v149, 0.0
    %158 = vadd.xlane.f32.xlu0 %v157
    %v159 = vpop.xlane.xlu0 %158
    %v160 = vsel %vm71, %v150, 0.0
    %161 = vadd.xlane.f32.xlu0 %v160
    %v162 = vpop.xlane.xlu0 %161
    %v163 = vsel %vm71, %v151, 0.0
    %164 = vadd.xlane.f32.xlu0 %v163
    %v165 = vpop.xlane.xlu0 %164
    %v166 = vsel %vm71, %v152, 0.0
    %167 = vadd.xlane.f32.xlu0 %v166
    %v168 = vpop.xlane.xlu0 %167
    %v169 = vsel %vm71, %v153, 0.0
    %170 = vadd.xlane.f32.xlu0 %v169
    %v171 = vpop.xlane.xlu0 %170
    %v172 = vsel %vm71, %v154, 0.0
    %173 = vadd.xlane.f32.xlu0 %v172
    %v174 = vpop.xlane.xlu0 %173
    %v175 = vsel %vm71, %v155, 0.0
    %176 = vadd.xlane.f32.xlu0 %v175
    %v177 = vpop.xlane.xlu0 %176
    %v178 = vsel %vm71, %v156, 0.0
    %179 = vadd.xlane.f32.xlu0 %v178
    %v180 = vpop.xlane.xlu0 %179
    %v181 = vld [vmem:[#allocation2] sm:$0x1]
    %v183 = vperm.slane %v181, 0
    %v185 = vadd.f32 %v159, %v183
    %v186 = vadd.f32 %v162, %v183
    %v187 = vadd.f32 %v165, %v183
    %v188 = vadd.f32 %v168, %v183
    %v189 = vadd.f32 %v171, %v183
    %v190 = vadd.f32 %v174, %v183
    %v191 = vadd.f32 %v177, %v183
    %v192 = vadd.f32 %v180, %v183
    %vm193 = vcmask 7168
    %v194 = vsel %vm193, %v185, -inf
    %v195 = vrot.slane %v194, 4
    %v196 = vmax.f32 %v194, %v195
    %v197 = vrot.slane %v196, 2
    %v198 = vmax.f32 %v196, %v197
    %v199 = vrot.slane %v198, 1
    %v200 = vmax.f32 %v198, %v199
    %v201 = vsel %vm193, %v186, -inf
    %v202 = vrot.slane %v201, 4
    %v203 = vmax.f32 %v201, %v202
    %v204 = vrot.slane %v203, 2
    %v205 = vmax.f32 %v203, %v204
    %v206 = vrot.slane %v205, 1
    %v207 = vmax.f32 %v205, %v206
    %v208 = vsel %vm193, %v187, -inf
    %v209 = vrot.slane %v208, 4
    %v210 = vmax.f32 %v208, %v209
    %v211 = vrot.slane %v210, 2
    %v212 = vmax.f32 %v210, %v211
    %v213 = vrot.slane %v212, 1
    %v214 = vmax.f32 %v212, %v213
    %v215 = vsel %vm193, %v188, -inf
    %v216 = vrot.slane %v215, 4
    %v217 = vmax.f32 %v215, %v216
    %v218 = vrot.slane %v217, 2
    %v219 = vmax.f32 %v217, %v218
    %v220 = vrot.slane %v219, 1
    %v221 = vmax.f32 %v219, %v220
    %v222 = vsel %vm193, %v189, -inf
    %v223 = vrot.slane %v222, 4
    %v224 = vmax.f32 %v222, %v223
    %v225 = vrot.slane %v224, 2
    %v226 = vmax.f32 %v224, %v225
    %v227 = vrot.slane %v226, 1
    %v228 = vmax.f32 %v226, %v227
    %v229 = vsel %vm193, %v190, -inf
    %v230 = vrot.slane %v229, 4
    %v231 = vmax.f32 %v229, %v230
    %v232 = vrot.slane %v231, 2
    %v233 = vmax.f32 %v231, %v232
    %v234 = vrot.slane %v233, 1
    %v235 = vmax.f32 %v233, %v234
    %v236 = vsel %vm193, %v191, -inf
    %v237 = vrot.slane %v236, 4
    %v238 = vmax.f32 %v236, %v237
    %v239 = vrot.slane %v238, 2
    %v240 = vmax.f32 %v238, %v239
    %v241 = vrot.slane %v240, 1
    %v242 = vmax.f32 %v240, %v241
    %v243 = vsel %vm193, %v192, -inf
    %v244 = vrot.slane %v243, 4
    %v245 = vmax.f32 %v243, %v244
    %v246 = vrot.slane %v245, 2
    %v247 = vmax.f32 %v245, %v246
    %v248 = vrot.slane %v247, 1
    %v249 = vmax.f32 %v247, %v248
    %v250 = vsub.f32 %v185, %v200
    %v251 = vsub.f32 %v186, %v207
    %v252 = vsub.f32 %v187, %v214
    %v253 = vsub.f32 %v188, %v221
    %v254 = vsub.f32 %v189, %v228
    %v255 = vsub.f32 %v190, %v235
    %v256 = vsub.f32 %v191, %v242
    %v257 = vsub.f32 %v192, %v249
    %v258 = vmul.f32 %v250, 1.442695
    %v259 = vpow.pop %v258
    %v260 = vmul.f32 %v251, 1.442695
    %v261 = vpow.pop %v260
    %v262 = vmul.f32 %v252, 1.442695
    %v263 = vpow.pop %v262
    %v264 = vmul.f32 %v253, 1.442695
    %v265 = vpow.pop %v264
    %v266 = vmul.f32 %v254, 1.442695
    %v267 = vpow.pop %v266
    %v268 = vmul.f32 %v255, 1.442695
    %v269 = vpow.pop %v268
    %v270 = vmul.f32 %v256, 1.442695
    %v271 = vpow.pop %v270
    %v272 = vmul.f32 %v257, 1.442695
    %v273 = vpow.pop %v272
    %v274 = vsel %vm193, %v259, 0.0
    %v275 = vrot.slane %v274, 4
    %v276 = vadd.f32 %v274, %v275
    %v277 = vrot.slane %v276, 2
    %v278 = vadd.f32 %v276, %v277
    %v279 = vrot.slane %v278, 1
    %v280 = vadd.f32 %v278, %v279
    %v281 = vsel %vm193, %v261, 0.0
    %v282 = vrot.slane %v281, 4
    %v283 = vadd.f32 %v281, %v282
    %v284 = vrot.slane %v283, 2
    %v285 = vadd.f32 %v283, %v284
    %v286 = vrot.slane %v285, 1
    %v287 = vadd.f32 %v285, %v286
    %v288 = vsel %vm193, %v263, 0.0
    %v289 = vrot.slane %v288, 4
    %v290 = vadd.f32 %v288, %v289
    %v291 = vrot.slane %v290, 2
    %v292 = vadd.f32 %v290, %v291
    %v293 = vrot.slane %v292, 1
    %v294 = vadd.f32 %v292, %v293
    %v295 = vsel %vm193, %v265, 0.0
    %v296 = vrot.slane %v295, 4
    %v297 = vadd.f32 %v295, %v296
    %v298 = vrot.slane %v297, 2
    %v299 = vadd.f32 %v297, %v298
    %v300 = vrot.slane %v299, 1
    %v301 = vadd.f32 %v299, %v300
    %v302 = vsel %vm193, %v267, 0.0
    %v303 = vrot.slane %v302, 4
    %v304 = vadd.f32 %v302, %v303
    %v305 = vrot.slane %v304, 2
    %v306 = vadd.f32 %v304, %v305
    %v307 = vrot.slane %v306, 1
    %v308 = vadd.f32 %v306, %v307
    %v309 = vsel %vm193, %v269, 0.0
    %v310 = vrot.slane %v309, 4
    %v311 = vadd.f32 %v309, %v310
    %v312 = vrot.slane %v311, 2
    %v313 = vadd.f32 %v311, %v312
    %v314 = vrot.slane %v313, 1
    %v315 = vadd.f32 %v313, %v314
    %v316 = vsel %vm193, %v271, 0.0
    %v317 = vrot.slane %v316, 4
    %v318 = vadd.f32 %v316, %v317
    %v319 = vrot.slane %v318, 2
    %v320 = vadd.f32 %v318, %v319
    %v321 = vrot.slane %v320, 1
    %v322 = vadd.f32 %v320, %v321
    %v323 = vsel %vm193, %v273, 0.0
    %v324 = vrot.slane %v323, 4
    %v325 = vadd.f32 %v323, %v324
    %v326 = vrot.slane %v325, 2
    %v327 = vadd.f32 %v325, %v326
    %v328 = vrot.slane %v327, 1
    %v329 = vadd.f32 %v327, %v328
    %v330 = vrcp.pop %v280
    %v331 = vrcp.pop %v287
    %v332 = vrcp.pop %v294
    %v333 = vrcp.pop %v301
    %v334 = vrcp.pop %v308
    %v335 = vrcp.pop %v315
    %v336 = vrcp.pop %v322
    %v337 = vrcp.pop %v329
    %v338 = vmul.f32 %v259, %v330
    %v339 = vmul.f32 %v261, %v331
    %v340 = vmul.f32 %v263, %v332
    %v341 = vmul.f32 %v265, %v333
    %v342 = vmul.f32 %v267, %v334
    %v343 = vmul.f32 %v269, %v335
    %v344 = vmul.f32 %v271, %v336
    %v345 = vmul.f32 %v273, %v337
    %347 = vset.pattern.permute.xlu0 0
    %348 = vperm.xlu0 %347, %v338
    %v349 = vpop.permute.xlu0 %348
    %352 = vset.pattern.permute.xlu0 0
    %353 = vperm.xlu0 %352, %v339
    %v354 = vpop.permute.xlu0 %353
    %357 = vset.pattern.permute.xlu0 0
    %358 = vperm.xlu0 %357, %v340
    %v359 = vpop.permute.xlu0 %358
    %362 = vset.pattern.permute.xlu0 0
    %363 = vperm.xlu0 %362, %v341
    %v364 = vpop.permute.xlu0 %363
    %367 = vset.pattern.permute.xlu0 0
    %368 = vperm.xlu0 %367, %v342
    %v369 = vpop.permute.xlu0 %368
    %372 = vset.pattern.permute.xlu0 0
    %373 = vperm.xlu0 %372, %v343
    %v374 = vpop.permute.xlu0 %373
    %377 = vset.pattern.permute.xlu0 0
    %378 = vperm.xlu0 %377, %v344
    %v379 = vpop.permute.xlu0 %378
    %382 = vset.pattern.permute.xlu0 0
    %383 = vperm.xlu0 %382, %v345
    %v384 = vpop.permute.xlu0 %383
    %v386 = vmul.f32 %v55, %v349
    %v387 = vmul.f32 %v56, %v354
    %v388 = vmul.f32 %v57, %v359
    %v389 = vmul.f32 %v58, %v364
    %v390 = vmul.f32 %v59, %v369
    %v391 = vmul.f32 %v60, %v374
    %v392 = vmul.f32 %v61, %v379
    %v393 = vmul.f32 %v62, %v384
    %v394 = vsel %vm71, %v386, 0.0
    %v395 = vrot.slane %v394, 4
    %v396 = vadd.f32 %v394, %v395
    %v397 = vrot.slane %v396, 2
    %v398 = vadd.f32 %v396, %v397
    %v399 = vrot.slane %v398, 1
    %v400 = vadd.f32 %v398, %v399
    %v401 = vsel %vm71, %v387, 0.0
    %v402 = vrot.slane %v401, 4
    %v403 = vadd.f32 %v401, %v402
    %v404 = vrot.slane %v403, 2
    %v405 = vadd.f32 %v403, %v404
    %v406 = vrot.slane %v405, 1
    %v407 = vadd.f32 %v405, %v406
    %v408 = vsel %vm71, %v388, 0.0
    %v409 = vrot.slane %v408, 4
    %v410 = vadd.f32 %v408, %v409
    %v411 = vrot.slane %v410, 2
    %v412 = vadd.f32 %v410, %v411
    %v413 = vrot.slane %v412, 1
    %v414 = vadd.f32 %v412, %v413
    %v415 = vsel %vm71, %v389, 0.0
    %v416 = vrot.slane %v415, 4
    %v417 = vadd.f32 %v415, %v416
    %v418 = vrot.slane %v417, 2
    %v419 = vadd.f32 %v417, %v418
    %v420 = vrot.slane %v419, 1
    %v421 = vadd.f32 %v419, %v420
    %v422 = vsel %vm71, %v390, 0.0
    %v423 = vrot.slane %v422, 4
    %v424 = vadd.f32 %v422, %v423
    %v425 = vrot.slane %v424, 2
    %v426 = vadd.f32 %v424, %v425
    %v427 = vrot.slane %v426, 1
    %v428 = vadd.f32 %v426, %v427
    %v429 = vsel %vm71, %v391, 0.0
    %v430 = vrot.slane %v429, 4
    %v431 = vadd.f32 %v429, %v430
    %v432 = vrot.slane %v431, 2
    %v433 = vadd.f32 %v431, %v432
    %v434 = vrot.slane %v433, 1
    %v435 = vadd.f32 %v433, %v434
    %v436 = vsel %vm71, %v392, 0.0
    %v437 = vrot.slane %v436, 4
    %v438 = vadd.f32 %v436, %v437
    %v439 = vrot.slane %v438, 2
    %v440 = vadd.f32 %v438, %v439
    %v441 = vrot.slane %v440, 1
    %v442 = vadd.f32 %v440, %v441
    %v443 = vsel %vm71, %v393, 0.0
    %v444 = vrot.slane %v443, 4
    %v445 = vadd.f32 %v443, %v444
    %v446 = vrot.slane %v445, 2
    %v447 = vadd.f32 %v445, %v446
    %v448 = vrot.slane %v447, 1
    %v449 = vadd.f32 %v447, %v448
    %vm458 = vcmask 1041409
    %v459 = vsel %vm458, %v407, %v400
    %vm460 = vcmask 1042434
    %v461 = vsel %vm460, %v414, %v459
    %vm462 = vcmask 1043459
    %v463 = vsel %vm462, %v421, %v461
    %vm464 = vcmask 1044484
    %v465 = vsel %vm464, %v428, %v463
    %vm466 = vcmask 1045509
    %v467 = vsel %vm466, %v435, %v465
    %vm468 = vcmask 1046534
    %v469 = vsel %vm468, %v442, %v467
    %vm470 = vcmask 1047559
    %v471 = vsel %vm470, %v449, %v469
    %473 = vst.msk [vmem:[#allocation8] sm:$0xff] %vm71, %v471
    // Predicated region
    $region30: #{tpu_custom_call.1} parent=1 // pred_check
      _
    $region31: #{tpu_custom_call.1} parent=1 // pred_check_branch
      %475 = sbr.rel (0) target = $region33
    $region32: #{tpu_custom_call.1} parent=1 // pred_region
      %477 = vsyncadd [#allocation5], 0
      %s479 = sshll.u32 [#allocation8], 4
      %s480 = int_to_ptr.vmem [resolvable:$true] %s479
      %s481 = sshll.u32 %s5, 4
      %s482 = int_to_ptr.hbm [resolvable:$true] %s481
      %484 = dma.vmem_to_hbm [thread:$0]  %s480, 128, %s482, [#allocation5]
    $region33: #{tpu_custom_call.1} parent=1 // pred_fallthru
      _
    // Predicated region
    $region34: #{tpu_custom_call.1} parent=1 // pred_check
      _
    $region35: #{tpu_custom_call.1} parent=1 // pred_check_branch
      %486 = sbr.rel (0) target = $region37
    $region36: #{tpu_custom_call.1} parent=1 // pred_region
      %488 = dma.done [#allocation5], 128
    $region37: #{tpu_custom_call.1} parent=1 // pred_fallthru
      _
    %489 = vsyncpa [#allocation4], 1
    %490 = vsyncpa [#allocation7], 1
    %491 = vsyncpa [#allocation5], 1

// kernel: tpu_custom_call.1
$region0: #{tpu_custom_call.1}
  #allocation0 [shape = 'u32[]', space=smem, size = 0x4, offset = 0x4, fixed_abs, tag = 'smem constant byte address 0x4 - core index']
  #allocation1 [shape = 'u32[72,128]{1,0:T(1,128)}', space=vmem, size = 0x9000, scoped, tag = 'internal scratch']
  #allocation2 [shape = 'f32[1,1]{1,0:T(1,128)S(1)}', space=vmem, size = 0x200, scoped, tag = 'scoped memory for tpu_custom_call.1']
  %s0 = inlined_call_operand.hbm [shape: f32[8,8,32], index: 0, kind: input, shape index: {}]
  %s1 = inlined_call_operand.hbm [shape: f32[32,32], index: 1, kind: input, shape index: {}]
  %s2 = inlined_call_operand.vmem [shape: f32[1,32], index: 2, kind: input, shape index: {}]
  %s3 = inlined_call_operand.vmem [shape: f32[1,32], index: 3, kind: input, shape index: {}]
  %s4 = inlined_call_operand.<no memory space> [shape: f32[1,1], index: 4, kind: input, shape index: {}]
  %s5 = inlined_call_operand.hbm [shape: f32[8,32], index: 5, kind: output, shape index: {}]
  %s6 = sld [smem:[#allocation0]]
  $region38: #{tpu_custom_call.1} parent=0
    _
  %s8 = ssub.s32 1, %s6
  %s9 = scalar_select 0, %s8, %s6
  %v10 = vstv %s4
  %11 = vst [vmem:[#allocation2] sm:$0x1] %v10
  $region1: #{tpu_custom_call.1} parent=0
    #allocation3 [shape = 'u8[32768]{0}', space=vmem, size = 0x8000, scoped, tag = 'input window, operand 0, single buffered']
    #allocation4 [shape = 's32[1]{0}', space=sflag, size = 0x4, scoped, tag = 'scoped memory for tpu_custom_call.1']
    #allocation5 [shape = 's32[1]{0}', space=sflag, size = 0x4, scoped, tag = 'scoped memory for tpu_custom_call.1']
    #allocation6 [shape = 'u8[16384]{0}', space=vmem, size = 0x4000, scoped, tag = 'input window, operand 1, single buffered']
    #allocation7 [shape = 's32[1]{0}', space=sflag, size = 0x4, scoped, tag = 'scoped memory for tpu_custom_call.1']
    #allocation8 [shape = 'u8[4096]{0}', space=vmem, size = 0x1000, scoped, tag = 'output window, operand 0, single buffered']
    %12 = vsyncpa [#allocation4], 0
    %13 = vsyncpa [#allocation7], 0
    %14 = vsyncpa [#allocation5], 0
    // Predicated region
    $region2: #{tpu_custom_call.1} parent=1 // pred_check
      _
    $region3: #{tpu_custom_call.1} parent=1 // pred_check_branch
      %16 = sbr.rel (0) target = $region5
    $region4: #{tpu_custom_call.1} parent=1 // pred_region
      %18 = vsyncadd [#allocation4], 0
      %s19 = sshll.u32 %s0, 4
      %s20 = int_to_ptr.hbm [resolvable:$true] %s19
      %s21 = sshll.u32 [#allocation3], 4
      %s22 = int_to_ptr.vmem [resolvable:$true] %s21
      %27 = dma.hbm_to_vmem [thread:$0]  %s20, 1024, %s22, [#allocation4], 128, 128, 8
    $region5: #{tpu_custom_call.1} parent=1 // pred_fallthru
      _
    // Predicated region
    $region6: #{tpu_custom_call.1} parent=1 // pred_check
      _
    $region7: #{tpu_custom_call.1} parent=1 // pred_check_branch
      %29 = sbr.rel (0) target = $region9
    $region8: #{tpu_custom_call.1} parent=1 // pred_region
      %31 = vsyncadd [#allocation7], 0
      %s32 = sshll.u32 %s1, 4
      %s33 = int_to_ptr.hbm [resolvable:$true] %s32
      %s34 = sshll.u32 [#allocation6], 4
      %s35 = int_to_ptr.vmem [resolvable:$true] %s34
      %40 = dma.hbm_to_vmem [thread:$0]  %s33, 512, %s35, [#allocation7], 128, 128, 8
    $region9: #{tpu_custom_call.1} parent=1 // pred_fallthru
      _
    // Predicated region
    $region10: #{tpu_custom_call.1} parent=1 // pred_check
      _
    $region11: #{tpu_custom_call.1} parent=1 // pred_check_branch
      %42 = sbr.rel (0) target = $region13
    $region12: #{tpu_custom_call.1} parent=1 // pred_region
      _
    $region13: #{tpu_custom_call.1} parent=1 // pred_fallthru
      _
    // Predicated region
    $region14: #{tpu_custom_call.1} parent=1 // pred_check
      _
    $region15: #{tpu_custom_call.1} parent=1 // pred_check_branch
      %44 = sbr.rel (0) target = $region17
    $region16: #{tpu_custom_call.1} parent=1 // pred_region
      _
    $region17: #{tpu_custom_call.1} parent=1 // pred_fallthru
      _
    // Predicated region
    $region18: #{tpu_custom_call.1} parent=1 // pred_check
      _
    $region19: #{tpu_custom_call.1} parent=1 // pred_check_branch
      %46 = sbr.rel (0) target = $region21
    $region20: #{tpu_custom_call.1} parent=1 // pred_region
      _
    $region21: #{tpu_custom_call.1} parent=1 // pred_fallthru
      _
    // Predicated region
    $region22: #{tpu_custom_call.1} parent=1 // pred_check
      _
    $region23: #{tpu_custom_call.1} parent=1 // pred_check_branch
      %48 = sbr.rel (0) target = $region25
    $region24: #{tpu_custom_call.1} parent=1 // pred_region
      %50 = dma.done [#allocation4], 1024
    $region25: #{tpu_custom_call.1} parent=1 // pred_fallthru
      _
    // Predicated region
    $region26: #{tpu_custom_call.1} parent=1 // pred_check
      _
    $region27: #{tpu_custom_call.1} parent=1 // pred_check_branch
      %52 = sbr.rel (0) target = $region29
    $region28: #{tpu_custom_call.1} parent=1 // pred_region
      %54 = dma.done [#allocation7], 512
    $region29: #{tpu_custom_call.1} parent=1 // pred_fallthru
      _
    %v55 = vld [vmem:[#allocation3] sm:$0xff]
    %v56 = vld [vmem:[#allocation3 + $0x8] sm:$0xff]
    %v57 = vld [vmem:[#allocation3 + $0x10] sm:$0xff]
    %v58 = vld [vmem:[#allocation3 + $0x18] sm:$0xff]
    %v59 = vld [vmem:[#allocation3 + $0x20] sm:$0xff]
    %v60 = vld [vmem:[#allocation3 + $0x28] sm:$0xff]
    %v61 = vld [vmem:[#allocation3 + $0x30] sm:$0xff]
    %v62 = vld [vmem:[#allocation3 + $0x38] sm:$0xff]
    %v63 = vld [vmem:[#allocation6] sm:$0xff]
    %v64 = vld [vmem:[#allocation6 + $0x8] sm:$0xff]
    %v65 = vld [vmem:[#allocation6 + $0x10] sm:$0xff]
    %v66 = vld [vmem:[#allocation6 + $0x18] sm:$0xff]
    %v67 = vld [vmem:[%s2] sm:$0x1]
    %v69 = vperm.slane %v67, 0
    %vm71 = vcmask 261120
    %v73 = vsel %vm71, %v55, 0
    %v76 = vsel %vm71, %v56, 0
    %v79 = vsel %vm71, %v57, 0
    %v82 = vsel %vm71, %v58, 0
    %v85 = vsel %vm71, %v59, 0
    %v88 = vsel %vm71, %v60, 0
    %v91 = vsel %vm71, %v61, 0
    %v94 = vsel %vm71, %v62, 0
    %96 = vmatpush.msra.mxu0 0.0
    %97 = vmatpush.msra.mxu0 0.0
    %98 = vmatpush.msra.mxu0 0.0
    %99 = vmatpush.msra.mxu0 0.0
    %100 = vmatpush.msra.mxu0 0.0
    %101 = vmatpush.msra.mxu0 0.0
    %102 = vmatpush.msra.mxu0 0.0
    %103 = vmatpush.msra.mxu0 0.0
    %104 = vmatpush.msra.mxu0 0.0
    %105 = vmatpush.msra.mxu0 0.0
    %106 = vmatpush.msra.mxu0 0.0
    %107 = vmatpush.msra.mxu0 0.0
    %108 = vmatpush.msra.mxu0 %v66
    %109 = vmatpush.msra.mxu0 %v65
    %110 = vmatpush.msra.mxu0 %v64
    %111 = vmatpush.msra.mxu0 %v63
    %112 = vmatmul.f32.gmra.mxu0 %v73
    %v113 = vpop.f32.mrf.mxu0
    %v114 = vadd.f32 %v69, %v113
    %115 = vmatmul.f32.gmra.mxu0 %v76
    %v116 = vpop.f32.mrf.mxu0
    %v117 = vadd.f32 %v69, %v116
    %118 = vmatmul.f32.gmra.mxu0 %v79
    %v119 = vpop.f32.mrf.mxu0
    %v120 = vadd.f32 %v69, %v119
    %121 = vmatmul.f32.gmra.mxu0 %v82
    %v122 = vpop.f32.mrf.mxu0
    %v123 = vadd.f32 %v69, %v122
    %124 = vmatmul.f32.gmra.mxu0 %v85
    %v125 = vpop.f32.mrf.mxu0
    %v126 = vadd.f32 %v69, %v125
    %127 = vmatmul.f32.gmra.mxu0 %v88
    %v128 = vpop.f32.mrf.mxu0
    %v129 = vadd.f32 %v69, %v128
    %130 = vmatmul.f32.gmra.mxu0 %v91
    %v131 = vpop.f32.mrf.mxu0
    %v132 = vadd.f32 %v69, %v131
    %133 = vmatmul.f32.gmra.mxu0 %v94
    %v134 = vpop.f32.mrf.mxu0
    %v135 = vadd.f32 %v69, %v134
    %136 = vdwg.mxu0
    %v137 = vtanh.pop %v114
    %v138 = vtanh.pop %v117
    %v139 = vtanh.pop %v120
    %v140 = vtanh.pop %v123
    %v141 = vtanh.pop %v126
    %v142 = vtanh.pop %v129
    %v143 = vtanh.pop %v132
    %v144 = vtanh.pop %v135
    %v145 = vld [vmem:[%s3] sm:$0x1]
    %v147 = vperm.slane %v145, 0
    %v149 = vmul.f32 %v137, %v147
    %v150 = vmul.f32 %v138, %v147
    %v151 = vmul.f32 %v139, %v147
    %v152 = vmul.f32 %v140, %v147
    %v153 = vmul.f32 %v141, %v147
    %v154 = vmul.f32 %v142, %v147
    %v155 = vmul.f32 %v143, %v147
    %v156 = vmul.f32 %v144, %v147
    %v157 = vsel %vm71, %v149, 0.0
    %158 = vadd.xlane.f32.xlu0 %v157
    %v159 = vpop.xlane.xlu0 %158
    %v160 = vsel %vm71, %v150, 0.0
    %161 = vadd.xlane.f32.xlu0 %v160
    %v162 = vpop.xlane.xlu0 %161
    %v163 = vsel %vm71, %v151, 0.0
    %164 = vadd.xlane.f32.xlu0 %v163
    %v165 = vpop.xlane.xlu0 %164
    %v166 = vsel %vm71, %v152, 0.0
    %167 = vadd.xlane.f32.xlu0 %v166
    %v168 = vpop.xlane.xlu0 %167
    %v169 = vsel %vm71, %v153, 0.0
    %170 = vadd.xlane.f32.xlu0 %v169
    %v171 = vpop.xlane.xlu0 %170
    %v172 = vsel %vm71, %v154, 0.0
    %173 = vadd.xlane.f32.xlu0 %v172
    %v174 = vpop.xlane.xlu0 %173
    %v175 = vsel %vm71, %v155, 0.0
    %176 = vadd.xlane.f32.xlu0 %v175
    %v177 = vpop.xlane.xlu0 %176
    %v178 = vsel %vm71, %v156, 0.0
    %179 = vadd.xlane.f32.xlu0 %v178
    %v180 = vpop.xlane.xlu0 %179
    %v181 = vld [vmem:[#allocation2] sm:$0x1]
    %v183 = vperm.slane %v181, 0
    %v185 = vadd.f32 %v159, %v183
    %v186 = vadd.f32 %v162, %v183
    %v187 = vadd.f32 %v165, %v183
    %v188 = vadd.f32 %v168, %v183
    %v189 = vadd.f32 %v171, %v183
    %v190 = vadd.f32 %v174, %v183
    %v191 = vadd.f32 %v177, %v183
    %v192 = vadd.f32 %v180, %v183
    %vm193 = vcmask 7168
    %v194 = vsel %vm193, %v185, -inf
    %v195 = vrot.slane %v194, 4
    %v196 = vmax.f32 %v194, %v195
    %v197 = vrot.slane %v196, 2
    %v198 = vmax.f32 %v196, %v197
    %v199 = vrot.slane %v198, 1
    %v200 = vmax.f32 %v198, %v199
    %v201 = vsel %vm193, %v186, -inf
    %v202 = vrot.slane %v201, 4
    %v203 = vmax.f32 %v201, %v202
    %v204 = vrot.slane %v203, 2
    %v205 = vmax.f32 %v203, %v204
    %v206 = vrot.slane %v205, 1
    %v207 = vmax.f32 %v205, %v206
    %v208 = vsel %vm193, %v187, -inf
    %v209 = vrot.slane %v208, 4
    %v210 = vmax.f32 %v208, %v209
    %v211 = vrot.slane %v210, 2
    %v212 = vmax.f32 %v210, %v211
    %v213 = vrot.slane %v212, 1
    %v214 = vmax.f32 %v212, %v213
    %v215 = vsel %vm193, %v188, -inf
    %v216 = vrot.slane %v215, 4
    %v217 = vmax.f32 %v215, %v216
    %v218 = vrot.slane %v217, 2
    %v219 = vmax.f32 %v217, %v218
    %v220 = vrot.slane %v219, 1
    %v221 = vmax.f32 %v219, %v220
    %v222 = vsel %vm193, %v189, -inf
    %v223 = vrot.slane %v222, 4
    %v224 = vmax.f32 %v222, %v223
    %v225 = vrot.slane %v224, 2
    %v226 = vmax.f32 %v224, %v225
    %v227 = vrot.slane %v226, 1
    %v228 = vmax.f32 %v226, %v227
    %v229 = vsel %vm193, %v190, -inf
    %v230 = vrot.slane %v229, 4
    %v231 = vmax.f32 %v229, %v230
    %v232 = vrot.slane %v231, 2
    %v233 = vmax.f32 %v231, %v232
    %v234 = vrot.slane %v233, 1
    %v235 = vmax.f32 %v233, %v234
    %v236 = vsel %vm193, %v191, -inf
    %v237 = vrot.slane %v236, 4
    %v238 = vmax.f32 %v236, %v237
    %v239 = vrot.slane %v238, 2
    %v240 = vmax.f32 %v238, %v239
    %v241 = vrot.slane %v240, 1
    %v242 = vmax.f32 %v240, %v241
    %v243 = vsel %vm193, %v192, -inf
    %v244 = vrot.slane %v243, 4
    %v245 = vmax.f32 %v243, %v244
    %v246 = vrot.slane %v245, 2
    %v247 = vmax.f32 %v245, %v246
    %v248 = vrot.slane %v247, 1
    %v249 = vmax.f32 %v247, %v248
    %v250 = vsub.f32 %v185, %v200
    %v251 = vsub.f32 %v186, %v207
    %v252 = vsub.f32 %v187, %v214
    %v253 = vsub.f32 %v188, %v221
    %v254 = vsub.f32 %v189, %v228
    %v255 = vsub.f32 %v190, %v235
    %v256 = vsub.f32 %v191, %v242
    %v257 = vsub.f32 %v192, %v249
    %v258 = vmul.f32 %v250, 1.442695
    %v259 = vpow.pop %v258
    %v260 = vmul.f32 %v251, 1.442695
    %v261 = vpow.pop %v260
    %v262 = vmul.f32 %v252, 1.442695
    %v263 = vpow.pop %v262
    %v264 = vmul.f32 %v253, 1.442695
    %v265 = vpow.pop %v264
    %v266 = vmul.f32 %v254, 1.442695
    %v267 = vpow.pop %v266
    %v268 = vmul.f32 %v255, 1.442695
    %v269 = vpow.pop %v268
    %v270 = vmul.f32 %v256, 1.442695
    %v271 = vpow.pop %v270
    %v272 = vmul.f32 %v257, 1.442695
    %v273 = vpow.pop %v272
    %v274 = vsel %vm193, %v259, 0.0
    %v275 = vrot.slane %v274, 4
    %v276 = vadd.f32 %v274, %v275
    %v277 = vrot.slane %v276, 2
    %v278 = vadd.f32 %v276, %v277
    %v279 = vrot.slane %v278, 1
    %v280 = vadd.f32 %v278, %v279
    %v281 = vsel %vm193, %v261, 0.0
    %v282 = vrot.slane %v281, 4
    %v283 = vadd.f32 %v281, %v282
    %v284 = vrot.slane %v283, 2
    %v285 = vadd.f32 %v283, %v284
    %v286 = vrot.slane %v285, 1
    %v287 = vadd.f32 %v285, %v286
    %v288 = vsel %vm193, %v263, 0.0
    %v289 = vrot.slane %v288, 4
    %v290 = vadd.f32 %v288, %v289
    %v291 = vrot.slane %v290, 2
    %v292 = vadd.f32 %v290, %v291
    %v293 = vrot.slane %v292, 1
    %v294 = vadd.f32 %v292, %v293
    %v295 = vsel %vm193, %v265, 0.0
    %v296 = vrot.slane %v295, 4
    %v297 = vadd.f32 %v295, %v296
    %v298 = vrot.slane %v297, 2
    %v299 = vadd.f32 %v297, %v298
    %v300 = vrot.slane %v299, 1
    %v301 = vadd.f32 %v299, %v300
    %v302 = vsel %vm193, %v267, 0.0
    %v303 = vrot.slane %v302, 4
    %v304 = vadd.f32 %v302, %v303
    %v305 = vrot.slane %v304, 2
    %v306 = vadd.f32 %v304, %v305
    %v307 = vrot.slane %v306, 1
    %v308 = vadd.f32 %v306, %v307
    %v309 = vsel %vm193, %v269, 0.0
    %v310 = vrot.slane %v309, 4
    %v311 = vadd.f32 %v309, %v310
    %v312 = vrot.slane %v311, 2
    %v313 = vadd.f32 %v311, %v312
    %v314 = vrot.slane %v313, 1
    %v315 = vadd.f32 %v313, %v314
    %v316 = vsel %vm193, %v271, 0.0
    %v317 = vrot.slane %v316, 4
    %v318 = vadd.f32 %v316, %v317
    %v319 = vrot.slane %v318, 2
    %v320 = vadd.f32 %v318, %v319
    %v321 = vrot.slane %v320, 1
    %v322 = vadd.f32 %v320, %v321
    %v323 = vsel %vm193, %v273, 0.0
    %v324 = vrot.slane %v323, 4
    %v325 = vadd.f32 %v323, %v324
    %v326 = vrot.slane %v325, 2
    %v327 = vadd.f32 %v325, %v326
    %v328 = vrot.slane %v327, 1
    %v329 = vadd.f32 %v327, %v328
    %v330 = vrcp.pop %v280
    %v331 = vrcp.pop %v287
    %v332 = vrcp.pop %v294
    %v333 = vrcp.pop %v301
    %v334 = vrcp.pop %v308
    %v335 = vrcp.pop %v315
    %v336 = vrcp.pop %v322
    %v337 = vrcp.pop %v329
    %v338 = vmul.f32 %v259, %v330
    %v339 = vmul.f32 %v261, %v331
    %v340 = vmul.f32 %v263, %v332
    %v341 = vmul.f32 %v265, %v333
    %v342 = vmul.f32 %v267, %v334
    %v343 = vmul.f32 %v269, %v335
    %v344 = vmul.f32 %v271, %v336
    %v345 = vmul.f32 %v273, %v337
    %347 = vset.pattern.permute.xlu0 0
    %348 = vperm.xlu0 %347, %v338
    %v349 = vpop.permute.xlu0 %348
    %352 = vset.pattern.permute.xlu0 0
    %353 = vperm.xlu0 %352, %v339
    %v354 = vpop.permute.xlu0 %353
    %357 = vset.pattern.permute.xlu0 0
    %358 = vperm.xlu0 %357, %v340
    %v359 = vpop.permute.xlu0 %358
    %362 = vset.pattern.permute.xlu0 0
    %363 = vperm.xlu0 %362, %v341
    %v364 = vpop.permute.xlu0 %363
    %367 = vset.pattern.permute.xlu0 0
    %368 = vperm.xlu0 %367, %v342
    %v369 = vpop.permute.xlu0 %368
    %372 = vset.pattern.permute.xlu0 0
    %373 = vperm.xlu0 %372, %v343
    %v374 = vpop.permute.xlu0 %373
    %377 = vset.pattern.permute.xlu0 0
    %378 = vperm.xlu0 %377, %v344
    %v379 = vpop.permute.xlu0 %378
    %382 = vset.pattern.permute.xlu0 0
    %383 = vperm.xlu0 %382, %v345
    %v384 = vpop.permute.xlu0 %383
    %v386 = vmul.f32 %v55, %v349
    %v387 = vmul.f32 %v56, %v354
    %v388 = vmul.f32 %v57, %v359
    %v389 = vmul.f32 %v58, %v364
    %v390 = vmul.f32 %v59, %v369
    %v391 = vmul.f32 %v60, %v374
    %v392 = vmul.f32 %v61, %v379
    %v393 = vmul.f32 %v62, %v384
    %v394 = vsel %vm71, %v386, 0.0
    %v395 = vrot.slane %v394, 4
    %v396 = vadd.f32 %v394, %v395
    %v397 = vrot.slane %v396, 2
    %v398 = vadd.f32 %v396, %v397
    %v399 = vrot.slane %v398, 1
    %v400 = vadd.f32 %v398, %v399
    %v401 = vsel %vm71, %v387, 0.0
    %v402 = vrot.slane %v401, 4
    %v403 = vadd.f32 %v401, %v402
    %v404 = vrot.slane %v403, 2
    %v405 = vadd.f32 %v403, %v404
    %v406 = vrot.slane %v405, 1
    %v407 = vadd.f32 %v405, %v406
    %v408 = vsel %vm71, %v388, 0.0
    %v409 = vrot.slane %v408, 4
    %v410 = vadd.f32 %v408, %v409
    %v411 = vrot.slane %v410, 2
    %v412 = vadd.f32 %v410, %v411
    %v413 = vrot.slane %v412, 1
    %v414 = vadd.f32 %v412, %v413
    %v415 = vsel %vm71, %v389, 0.0
    %v416 = vrot.slane %v415, 4
    %v417 = vadd.f32 %v415, %v416
    %v418 = vrot.slane %v417, 2
    %v419 = vadd.f32 %v417, %v418
    %v420 = vrot.slane %v419, 1
    %v421 = vadd.f32 %v419, %v420
    %v422 = vsel %vm71, %v390, 0.0
    %v423 = vrot.slane %v422, 4
    %v424 = vadd.f32 %v422, %v423
    %v425 = vrot.slane %v424, 2
    %v426 = vadd.f32 %v424, %v425
    %v427 = vrot.slane %v426, 1
    %v428 = vadd.f32 %v426, %v427
    %v429 = vsel %vm71, %v391, 0.0
    %v430 = vrot.slane %v429, 4
    %v431 = vadd.f32 %v429, %v430
    %v432 = vrot.slane %v431, 2
    %v433 = vadd.f32 %v431, %v432
    %v434 = vrot.slane %v433, 1
    %v435 = vadd.f32 %v433, %v434
    %v436 = vsel %vm71, %v392, 0.0
    %v437 = vrot.slane %v436, 4
    %v438 = vadd.f32 %v436, %v437
    %v439 = vrot.slane %v438, 2
    %v440 = vadd.f32 %v438, %v439
    %v441 = vrot.slane %v440, 1
    %v442 = vadd.f32 %v440, %v441
    %v443 = vsel %vm71, %v393, 0.0
    %v444 = vrot.slane %v443, 4
    %v445 = vadd.f32 %v443, %v444
    %v446 = vrot.slane %v445, 2
    %v447 = vadd.f32 %v445, %v446
    %v448 = vrot.slane %v447, 1
    %v449 = vadd.f32 %v447, %v448
    %vm458 = vcmask 1041409
    %v459 = vsel %vm458, %v407, %v400
    %vm460 = vcmask 1042434
    %v461 = vsel %vm460, %v414, %v459
    %vm462 = vcmask 1043459
    %v463 = vsel %vm462, %v421, %v461
    %vm464 = vcmask 1044484
    %v465 = vsel %vm464, %v428, %v463
    %vm466 = vcmask 1045509
    %v467 = vsel %vm466, %v435, %v465
    %vm468 = vcmask 1046534
    %v469 = vsel %vm468, %v442, %v467
    %vm470 = vcmask 1047559
    %v471 = vsel %vm470, %v449, %v469
    %473 = vst.msk [vmem:[#allocation8] sm:$0xff] %vm71, %v471
    // Predicated region
    $region30: #{tpu_custom_call.1} parent=1 // pred_check
      _
    $region31: #{tpu_custom_call.1} parent=1 // pred_check_branch
      %475 = sbr.rel (0) target = $region33
    $region32: #{tpu_custom_call.1} parent=1 // pred_region
      %477 = vsyncadd [#allocation5], 0
      %s479 = sshll.u32 [#allocation8], 4
      %s480 = int_to_ptr.vmem [resolvable:$true] %s479
      %s481 = sshll.u32 %s5, 4
      %s482 = int_to_ptr.hbm [resolvable:$true] %s481
      %484 = dma.vmem_to_hbm [thread:$0]  %s480, 128, %s482, [#allocation5]
    $region33: #{tpu_custom_call.1} parent=1 // pred_fallthru
      _
    // Predicated region
    $region34: #{tpu_custom_call.1} parent=1 // pred_check
      _
    $region35: #{tpu_custom_call.1} parent=1 // pred_check_branch
      %486 = sbr.rel (0) target = $region37
    $region36: #{tpu_custom_call.1} parent=1 // pred_region
      %488 = dma.done [#allocation5], 128
    $region37: #{tpu_custom_call.1} parent=1 // pred_fallthru
      _
    %489 = vsyncpa [#allocation4], 1
    %490 = vsyncpa [#allocation7], 1
    %491 = vsyncpa [#allocation5], 1

</llo_original>
